<compile_context>
chip_gen: v6e
topology: v6e:2x2x1
jax: 0.10.0
libtpu: 0.0.40
codegen_flags: <defaults>
</compile_context>

<pallas_src>
import functools

import jax
import jax.numpy as jnp
from jax.experimental import pallas as pl
from jax.experimental.pallas import tpu as pltpu


VMEM_LIMIT_BYTES = 48 << 20          # below v7x's 64 MiB physical, above all defaults
TILE_VMEM_BUDGET = 24 << 20          # double-buffered x+out budget for tile selection


# ---------------------------------------------------------------------------
# Pass 1: gate = GAP -> Linear -> softmax(f32) -> cast -> top-k mask
# ---------------------------------------------------------------------------
def gate_topk_kernel(x_ref, wgt_ref, bg_ref, g_ref, acc_ref, *, hw, num_expert):
    # x_ref   : (1, C, T)      spatial tile of batch element b (T % 128 == 0)
    # wgt_ref : (C, E)         gate weight, transposed so E sits on lanes
    # bg_ref  : (1, E)         gate bias
    # g_ref   : (1, 1, E)      out: masked routing weights for batch element b
    # acc_ref : (C, 128) f32   scratch: lane-wise running sums over the tiles
    j = pl.program_id(1)
    n_j = pl.num_programs(1)

    @pl.when(j == 0)
    def _():
        acc_ref[...] = jnp.zeros_like(acc_ref)

    x = x_ref[0].astype(jnp.float32)                       # (C, T)
    t = x.shape[1]
    acc = acc_ref[...]
    for i in range(t // 128):                              # pure VPU adds, no XLU
        acc = acc + x[:, i * 128:(i + 1) * 128]
    acc_ref[...] = acc

    @pl.when(j == n_j - 1)
    def _():
        # single cross-lane reduce in the epilogue -> global average pool
        mean = jnp.sum(acc_ref[...], axis=1, keepdims=True) * jnp.float32(1.0 / hw)
        # gate linear as broadcast-multiply + sublane reduce (tiny; no MXU needed)
        logits = jnp.sum(wgt_ref[...].astype(jnp.float32) * mean,
                         axis=0, keepdims=True) + bg_ref[...].astype(jnp.float32)
        # softmax in f32 (matches F.softmax(..., dtype=torch.float))
        m = jnp.max(logits, axis=1, keepdims=True)
        ex = jnp.exp(logits - m)
        w = ex / jnp.sum(ex, axis=1, keepdims=True)        # (1, E) f32
        # cast to input dtype *before* top-k / masking (matches .to(inputs.dtype))
        wc = w.astype(g_ref.dtype).astype(jnp.float32)

        # top-k mask: keep the `num_expert` largest weights (first index on ties)
        e_tot = wc.shape[1]
        col = jax.lax.broadcasted_iota(jnp.int32, (1, e_tot), 1)
        keep = jnp.zeros_like(wc)
        remaining = wc
        for _ in range(num_expert):
            mx = jnp.max(remaining, axis=1, keepdims=True)
            first = jnp.min(jnp.where(remaining >= mx, col, e_tot),
                            axis=1, keepdims=True)
            sel = col == first
            keep = keep + sel.astype(jnp.float32)
            remaining = jnp.where(sel, jnp.float32(-jnp.inf), remaining)

        g_ref[0] = (wc * keep).astype(g_ref.dtype)         # (1, E)


# ---------------------------------------------------------------------------
# Pass 2: out = x + W_comb[b] @ x + b_comb[b]     (one matmul per tile)
# ---------------------------------------------------------------------------
def moe_apply_kernel(w_ref, b_ref, x_ref, o_ref):
    # w_ref : (1, C, C)   combined expert weight for batch element b
    # b_ref : (1, C, 1)   combined expert bias
    # x_ref : (1, C, T)   lane-dense spatial tile
    # o_ref : (1, C, T)
    x_b = x_ref[0]                                         # (C, T)
    y = jnp.dot(w_ref[0], x_b,
                preferred_element_type=jnp.float32) + b_ref[0].astype(jnp.float32)
    o_ref[0] = (x_b.astype(jnp.float32) + y).astype(o_ref.dtype)


# ---------------------------------------------------------------------------
# Wrapper
# ---------------------------------------------------------------------------
def _pick_spatial_tile(hw_pad, c, itemsize,
                       budget_bytes=TILE_VMEM_BUDGET, cap=4096):
    """Largest multiple of 128 dividing hw_pad whose double-buffered x+out
    footprint fits the VMEM budget (headroom left for the (C,C) weights)."""
    max_bytes = budget_bytes - 2 * c * c * itemsize
    best, t = 128, 128
    while t <= min(hw_pad, cap):
        if hw_pad % t == 0 and 4 * c * t * itemsize <= max_bytes:
            best = t
        t += 128
    return best


def moe_layer(x, k, gate_w, gate_b, expert_w, expert_b, *, num_expert=1):
    """x: (B, C, H, W). gate_w: (E, C), gate_b: (E,),
    expert_w: (E, C, C), expert_b: (E, C). Returns (B, C, H, W)."""
    del k  # TODO(synk): opaque expert-conditioning input, unused by 1x1-conv experts
    B, C, H, W = x.shape
    E = expert_w.shape[0]
    assert 1 <= num_expert <= E

    HW = H * W
    HW_pad = pl.cdiv(HW, 128) * 128
    itemsize = jnp.dtype(x.dtype).itemsize
    t_hw = _pick_spatial_tile(HW_pad, C, itemsize)
    n_hw = HW_pad // t_hw

    x_flat = x.reshape(B, C, HW)
    if HW_pad != HW:
        # zero-pad spatial so every tile is lane-dense; zeros don't affect sums
        x_flat = jnp.pad(x_flat, ((0, 0), (0, 0), (0, HW_pad - HW)))

    wg_t = jnp.transpose(gate_w).astype(x.dtype)           # (C, E)
    bg_row = gate_b.reshape(1, E).astype(jnp.float32)

    # ---- pass 1: masked routing weights g (B, E) ----
    g = pl.pallas_call(
        functools.partial(gate_topk_kernel, hw=HW, num_expert=num_expert),
        out_shape=jax.ShapeDtypeStruct((B, 1, E), x.dtype),
        grid_spec=pltpu.PrefetchScalarGridSpec(
            num_scalar_prefetch=0,
            grid=(B, n_hw),
            in_specs=[
                pl.BlockSpec((1, C, t_hw), lambda b, j: (b, 0, j)),
                pl.BlockSpec((C, E), lambda b, j: (0, 0)),
                pl.BlockSpec((1, E), lambda b, j: (0, 0)),
            ],
            out_specs=pl.BlockSpec((1, 1, E), lambda b, j: (b, 0, 0)),
            scratch_shapes=[pltpu.VMEM((C, 128), jnp.float32)],
        ),
        compiler_params=pltpu.CompilerParams(
            dimension_semantics=("parallel", "arbitrary"),
            vmem_limit_bytes=VMEM_LIMIT_BYTES),
    )(x_flat, wg_t, bg_row)

    g = g.reshape(B, E)

    # ---- fold routing into ONE combined expert per batch element (tiny XLA op) ----
    #   out = x + sum_e g_e (W_e x + b_e) = x + (sum_e g_e W_e) x + (sum_e g_e b_e)
    gf = g.astype(jnp.float32)
    w_comb = jnp.einsum('be,eij->bij', gf, expert_w.astype(jnp.float32))   # (B, C, C)
    b_comb = jnp.einsum('be,ec->bc', gf, expert_b.astype(jnp.float32))     # (B, C)
    w_comb = w_comb.astype(x.dtype)
    b_comb = b_comb.reshape(B, C, 1).astype(jnp.float32)

    # ---- pass 2: single matmul per tile, output written in final layout ----
    out_flat = pl.pallas_call(
        moe_apply_kernel,
        out_shape=jax.ShapeDtypeStruct((B, C, HW_pad), x.dtype),
        grid_spec=pltpu.PrefetchScalarGridSpec(
            num_scalar_prefetch=0,
            grid=(B, n_hw),
            in_specs=[
                pl.BlockSpec((1, C, C), lambda b, j: (b, 0, 0)),    # combined weight
                pl.BlockSpec((1, C, 1), lambda b, j: (b, 0, 0)),    # combined bias
                pl.BlockSpec((1, C, t_hw), lambda b, j: (b, 0, j)), # x tile
            ],
            out_specs=pl.BlockSpec((1, C, t_hw), lambda b, j: (b, 0, j)),
        ),
        compiler_params=pltpu.CompilerParams(
            dimension_semantics=("parallel", "parallel"),
            vmem_limit_bytes=VMEM_LIMIT_BYTES),
    )(w_comb, b_comb, x_flat)

    if HW_pad != HW:
        out_flat = out_flat[:, :, :HW]
    return out_flat.reshape(B, C, H, W)


# ---------------------------------------------------------------------------
# Pure-JAX reference (mirrors the PyTorch forward with the same concrete
# gate / experts) for a correctness check.
# ---------------------------------------------------------------------------
def reference(x, k, gate_w, gate_b, expert_w, expert_b, num_expert):
    del k
    B = x.shape[0]
    E = expert_w.shape[0]
    pooled = jnp.mean(x, axis=(2, 3))                                 # (B, C)
    logits = pooled @ gate_w.T + gate_b[None, :]                      # (B, E)
    weights = jax.nn.softmax(logits.astype(jnp.float32), axis=1).astype(x.dtype)
    topk_vals, topk_idx = jax.lax.top_k(weights, num_expert)
    exp_w = jnp.zeros_like(weights)
    exp_w = exp_w.at[jnp.arange(B)[:, None], topk_idx].set(topk_vals)
    out = x
    for e in range(E):
        y = jnp.einsum('oc,bchw->bohw', expert_w[e], x) \
            + expert_b[e][None, :, None, None]
        out = out + y * exp_w[:, e][:, None, None, None]
    return out


if __name__ == "__main__":
    key = jax.random.PRNGKey(0)
    kx, kk, kwg, kbg, kwe, kbe = jax.random.split(key, 6)

    B, C, E = 2, 8, 4

    gate_w = jax.random.normal(kwg, (E, C), jnp.float32) * 0.5
    gate_b = jax.random.normal(kbg, (E,), jnp.float32) * 0.1
    expert_w = jax.random.normal(kwe, (E, C, C), jnp.float32) * (1.0 / C ** 0.5)
    expert_b = jax.random.normal(kbe, (E, C), jnp.float32) * 0.1
    k = jax.random.normal(kk, (B, 8), jnp.float32)    # opaque expert conditioning

    # (H, W) cases: 128-aligned spatial AND a non-128 spatial (exercises padding)
    for (H, W) in ((16, 16), (12, 12)):
        x = jax.random.normal(kx, (B, C, H, W), jnp.float32)
        for ne in (1, 2):                              # top-1 and top-2 routing
            out = moe_layer(x, k, gate_w, gate_b, expert_w, expert_b,
                            num_expert=ne)
            out = jax.block_until_ready(out)
            ref = reference(x, k, gate_w, gate_b, expert_w, expert_b, ne)
            assert out.shape == (B, C, H, W), out.shape
            err = float(jnp.max(jnp.abs(out - ref)))
            assert err < 1e-4, f"H={H} W={W} num_expert={ne}: max abs err {err}"

    print("KERNEL_OK")
</pallas_src>

<mosaic_0001>
module attributes {stable_mosaic.version = 11 : i64} {
  func.func @gate_topk_kernel(%arg0: i32, %arg1: i32, %arg2: memref<1x8x256xf32, #tpu.memory_space<vmem>>, %arg3: memref<8x4xf32, #tpu.memory_space<vmem>>, %arg4: memref<1x4xf32, #tpu.memory_space<vmem>>, %arg5: memref<1x1x4xf32, #tpu.memory_space<vmem>>, %arg6: memref<8x128xf32, #tpu.memory_space<vmem>>) attributes {dimension_semantics = [#tpu.dimension_semantics<parallel>, #tpu.dimension_semantics<arbitrary>], iteration_bounds = array<i64: 2, 1>, scalar_prefetch = 0 : i64, scratch_operands = 1 : i64, tpu.core_type = #tpu.core_type<tc>, window_params = [{transform_indices = @transform_0, window_bounds = array<i64: 1, 8, 256>}, {pipeline_mode = #tpu.pipeline_mode<synchronous>, transform_indices = @transform_1, window_bounds = array<i64: 8, 4>}, {pipeline_mode = #tpu.pipeline_mode<synchronous>, transform_indices = @transform_2, window_bounds = array<i64: 1, 4>}, {transform_indices = @transform_3, window_bounds = array<i64: 1, 1, 4>}]} {
    %c0_i32 = arith.constant 0 : i32
    %0 = arith.cmpi eq, %arg1, %c0_i32 : i32
    %1 = arith.extui %0 : i1 to i32
    %c0_i32_0 = arith.constant 0 : i32
    %2 = arith.cmpi ne, %1, %c0_i32_0 : i32
    scf.if %2 {
      %cst = arith.constant 0.000000e+00 : f32
      %14 = vector.broadcast %cst : f32 to vector<8x128xf32>
      %c0_9 = arith.constant 0 : index
      %c0_10 = arith.constant 0 : index
      %15 = vector.load %arg6[%c0_9, %c0_10] : memref<8x128xf32, #tpu.memory_space<vmem>>, vector<8x128xf32>
      tpu.vector_store %arg6[%c0_9, %c0_10], %14 {strides = array<i32>} : memref<8x128xf32, #tpu.memory_space<vmem>>, vector<8x128xf32>,
    } else {
    }
    %c0 = arith.constant 0 : index
    %c0_1 = arith.constant 0 : index
    %c0_2 = arith.constant 0 : index
    %3 = vector.load %arg2[%c0, %c0_1, %c0_2] : memref<1x8x256xf32, #tpu.memory_space<vmem>>, vector<1x8x256xf32>
    %4 = vector.shape_cast %3 : vector<1x8x256xf32> to vector<8x256xf32>
    %c0_3 = arith.constant 0 : index
    %c0_4 = arith.constant 0 : index
    %5 = vector.load %arg6[%c0_3, %c0_4] : memref<8x128xf32, #tpu.memory_space<vmem>>, vector<8x128xf32>
    %6 = vector.extract_strided_slice %4 {offsets = [0, 0], sizes = [8, 128], strides = [1, 1]} : vector<8x256xf32> to vector<8x128xf32>
    %7 = arith.addf %5, %6 : vector<8x128xf32>
    %8 = vector.extract_strided_slice %4 {offsets = [0, 128], sizes = [8, 128], strides = [1, 1]} : vector<8x256xf32> to vector<8x128xf32>
    %9 = arith.addf %7, %8 : vector<8x128xf32>
    %c0_5 = arith.constant 0 : index
    %c0_6 = arith.constant 0 : index
    %10 = vector.load %arg6[%c0_5, %c0_6] : memref<8x128xf32, #tpu.memory_space<vmem>>, vector<8x128xf32>
    tpu.vector_store %arg6[%c0_5, %c0_6], %9 {strides = array<i32>} : memref<8x128xf32, #tpu.memory_space<vmem>>, vector<8x128xf32>,
    %c0_i32_7 = arith.constant 0 : i32
    %11 = arith.cmpi eq, %arg1, %c0_i32_7 : i32
    %12 = arith.extui %11 : i1 to i32
    %c0_i32_8 = arith.constant 0 : i32
    %13 = arith.cmpi ne, %12, %c0_i32_8 : i32
    scf.if %13 {
      %c0_9 = arith.constant 0 : index
      %c0_10 = arith.constant 0 : index
      %14 = vector.load %arg6[%c0_9, %c0_10] : memref<8x128xf32, #tpu.memory_space<vmem>>, vector<8x128xf32>
      %cst = arith.constant dense<0.000000e+00> : vector<8xf32>
      %15 = vector.multi_reduction <add>, %14, %cst [1] : vector<8x128xf32> to vector<8xf32>
      %16 = vector.shape_cast %15 : vector<8xf32> to vector<8x1xf32>
      %cst_11 = arith.constant 3.906250e-03 : f32
      %17 = vector.broadcast %cst_11 : f32 to vector<8x1xf32>
      %18 = arith.mulf %16, %17 : vector<8x1xf32>
      %c0_12 = arith.constant 0 : index
      %c0_13 = arith.constant 0 : index
      %19 = vector.load %arg3[%c0_12, %c0_13] : memref<8x4xf32, #tpu.memory_space<vmem>>, vector<8x4xf32>
      %20 = vector.broadcast %18 : vector<8x1xf32> to vector<8x4xf32>
      %21 = arith.mulf %19, %20 : vector<8x4xf32>
      %cst_14 = arith.constant dense<0.000000e+00> : vector<4xf32>
      %22 = vector.multi_reduction <add>, %21, %cst_14 [0] : vector<8x4xf32> to vector<4xf32>
      %23 = vector.shape_cast %22 : vector<4xf32> to vector<1x4xf32>
      %c0_15 = arith.constant 0 : index
      %c0_16 = arith.constant 0 : index
      %24 = vector.load %arg4[%c0_15, %c0_16] : memref<1x4xf32, #tpu.memory_space<vmem>>, vector<1x4xf32>
      %25 = arith.addf %23, %24 : vector<1x4xf32>
      %cst_17 = arith.constant dense<0xFF800000> : vector<1xf32>
      %26 = vector.multi_reduction <maximumf>, %25, %cst_17 [1] : vector<1x4xf32> to vector<1xf32>
      %27 = vector.shape_cast %26 : vector<1xf32> to vector<1x1xf32>
      %28 = vector.broadcast %27 : vector<1x1xf32> to vector<1x4xf32>
      %29 = arith.subf %25, %28 : vector<1x4xf32>
      %30 = math.exp %29 : vector<1x4xf32>
      %cst_18 = arith.constant dense<0.000000e+00> : vector<1xf32>
      %31 = vector.multi_reduction <add>, %30, %cst_18 [1] : vector<1x4xf32> to vector<1xf32>
      %32 = vector.shape_cast %31 : vector<1xf32> to vector<1x1xf32>
      %33 = vector.broadcast %32 : vector<1x1xf32> to vector<1x4xf32>
      %34 = arith.divf %30, %33 : vector<1x4xf32>
      %35 = tpu.iota {dimensions = array<i32: 1>} : vector<1x4xi32>
      %cst_19 = arith.constant 0.000000e+00 : f32
      %36 = vector.broadcast %cst_19 : f32 to vector<1x4xf32>
      %cst_20 = arith.constant dense<0xFF800000> : vector<1xf32>
      %37 = vector.multi_reduction <maximumf>, %34, %cst_20 [1] : vector<1x4xf32> to vector<1xf32>
      %38 = vector.shape_cast %37 : vector<1xf32> to vector<1x1xf32>
      %39 = vector.broadcast %38 : vector<1x1xf32> to vector<1x4xf32>
      %40 = arith.cmpf oge, %34, %39 : vector<1x4xf32>
      %c4_i32 = arith.constant 4 : i32
      %41 = vector.broadcast %c4_i32 : i32 to vector<1x4xi32>
      %42 = arith.select %40, %35, %41 : vector<1x4xi1>, vector<1x4xi32>
      %cst_21 = arith.constant dense<2147483647> : vector<1xi32>
      %43 = vector.multi_reduction <minsi>, %42, %cst_21 [1] : vector<1x4xi32> to vector<1xi32>
      %44 = vector.shape_cast %43 : vector<1xi32> to vector<1x1xi32>
      %45 = vector.broadcast %44 : vector<1x1xi32> to vector<1x4xi32>
      %46 = arith.cmpi eq, %35, %45 : vector<1x4xi32>
      %47 = arith.extui %46 : vector<1x4xi1> to vector<1x4xi32>
      %48 = arith.sitofp %47 : vector<1x4xi32> to vector<1x4xf32>
      %49 = arith.addf %36, %48 : vector<1x4xf32>
      %50 = arith.mulf %34, %49 : vector<1x4xf32>
      %c0_22 = arith.constant 0 : index
      %c0_23 = arith.constant 0 : index
      %c0_24 = arith.constant 0 : index
      %51 = vector.load %arg5[%c0_22, %c0_23, %c0_24] : memref<1x1x4xf32, #tpu.memory_space<vmem>>, vector<1x1x4xf32>
      %52 = vector.shape_cast %51 : vector<1x1x4xf32> to vector<1x4xf32>
      %53 = vector.shape_cast %50 : vector<1x4xf32> to vector<1x1x4xf32>
      tpu.vector_store %arg5[%c0_22, %c0_23, %c0_24], %53 {strides = array<i32>} : memref<1x1x4xf32, #tpu.memory_space<vmem>>, vector<1x1x4xf32>,
    } else {
    }
    return
  }
  func.func @transform_0(%arg0: i32, %arg1: i32) -> (i32, i32, i32) {
    %c0_i32 = arith.constant 0 : i32
    %c0_i32_0 = arith.constant 0 : i32
    return %arg0, %c0_i32, %arg1 : i32, i32, i32
  }
  func.func @transform_1(%arg0: i32, %arg1: i32) -> (i32, i32) {
    %c0_i32 = arith.constant 0 : i32
    %c0_i32_0 = arith.constant 0 : i32
    %c0_i32_1 = arith.constant 0 : i32
    return %c0_i32, %c0_i32_0 : i32, i32
  }
  func.func @transform_2(%arg0: i32, %arg1: i32) -> (i32, i32) {
    %c0_i32 = arith.constant 0 : i32
    %c0_i32_0 = arith.constant 0 : i32
    %c0_i32_1 = arith.constant 0 : i32
    return %c0_i32, %c0_i32_0 : i32, i32
  }
  func.func @transform_3(%arg0: i32, %arg1: i32) -> (i32, i32, i32) {
    %c0_i32 = arith.constant 0 : i32
    %c0_i32_0 = arith.constant 0 : i32
    %c0_i32_1 = arith.constant 0 : i32
    return %arg0, %c0_i32, %c0_i32_0 : i32, i32, i32
  }
}

</mosaic_0001>

<llo_original>
// kernel: tpu_custom_call.1
$region0: #{tpu_custom_call.1}
  #allocation0 [shape = 'u32[]', space=smem, size = 0x4, offset = 0x4, fixed_abs, tag = 'smem constant byte address 0x4 - core index']
  #allocation1 [shape = 'u32[144,128]{1,0:T(1,128)}', space=vmem, size = 0x12000, scoped, tag = 'internal scratch']
  #allocation2 [shape = 'f32[8,128]{1,0:T(8,128)}', space=vmem, size = 0x1000, scoped, tag = 'scratch operand']
  %s0 = inlined_call_operand.hbm [shape: f32[2,8,256], index: 0, kind: input, shape index: {}]
  %s1 = inlined_call_operand.vmem [shape: f32[8,4], index: 1, kind: input, shape index: {}]
  %s2 = inlined_call_operand.vmem [shape: f32[1,4], index: 2, kind: input, shape index: {}]
  %s3 = inlined_call_operand.hbm [shape: f32[2,1,4], index: 3, kind: output, shape index: {}]
  %s4 = sld [smem:[#allocation0]]
  $region57: #{tpu_custom_call.1} parent=0
    _
  %s6 = ssub.s32 1, %s4
  %s7 = scalar_select 0, %s6, %s4
  $region1: #{tpu_custom_call.1} parent=0
    #allocation3 [shape = 'u8[16384]{0}', space=vmem, size = 0x4000, scoped, tag = 'input window, operand 0']
    #allocation4 [shape = 's32[2]{0}', space=sflag, size = 0x8, scoped, tag = 'scoped memory for tpu_custom_call.1']
    #allocation5 [shape = 's32[2]{0}', space=sflag, size = 0x8, scoped, tag = 'scoped memory for tpu_custom_call.1']
    #allocation6 [shape = 'u8[1024]{0}', space=vmem, size = 0x400, scoped, tag = 'output window, operand 0']
    %8 = vsyncpa [#allocation4], 0
    %s9 = scalar_lea.sflag [#allocation4], 1
    %10 = vsyncpa %s9, 0
    %11 = vsyncpa [#allocation5], 0
    %s12 = scalar_lea.sflag [#allocation5], 1
    %13 = vsyncpa %s12, 0
    loop: start=0, step=1, limit=4
    $region2: #{tpu_custom_call.1} parent=1 // loop_pre_header
      _
    $region3: #{tpu_custom_call.1} parent=1 // loop_header
      %s15 = sphi 0, %s19
      %p16 = scmp.ge.s32.totalorder %s15, 4
      %s22 = sphi 0, %s34
      %s23 = sphi 0, %s30
      %s24 = sphi 0, %s22
      %s25 = sphi 0, %s23
      %s26 = sphi 0, %s24
      %s27 = sphi 0, %s25
      %s39 = sphi 0, %s41
      %s42 = sphi 0, %s39
      %s43 = sphi 0, %s42
      %s59 = sphi 0, %s43
      %s63 = sphi 0, %s63
      %s65 = sphi 0, %s63
      %s66 = sphi 0, %s65
      %s80 = sphi 0, %s66
      %s84 = sphi 0, %s84
      %s86 = sphi 0, %s84
      %s87 = sphi 0, %s86
      %s101 = sphi 0, %s87
      %s107 = sphi 0, %s109
      %s110 = sphi 0, %s107
      %s111 = sphi 0, %s110
      %s127 = sphi 0, %s111
    $region4: #{tpu_custom_call.1} parent=1 // loop_header_branch
      %18 = sbr.rel (%p16) target = $region8
    $region5: #{tpu_custom_call.1} parent=1 // loop_body
      %s20 = ssub.s32 %s15, 1
      %s21 = ssub.s32 %s15, 2
      %s28 = sadd.s32 1, %s23
      %p29 = scmp.ge.s32.totalorder %s28, 1
      %s30 = scalar_select %p29, 0, %s28
      %s31 = sadd.s32 1, %s22
      %s32 = scalar_select %p29, %s31, %s22
      %p33 = scmp.ge.s32.totalorder %s32, 2
      %s34 = scalar_select %p33, 0, %s32
      %s35 = ssub.s32 %s22, %s34
      %s36 = ssub.s32 %s23, %s30
      %s37 = sor.u32 %s35, %s36
      %p38 = scmp.eq.s32.totalorder %s37, 0
      %s40 = sadd.s32 %s39, 1
      %s41 = scalar_select %p38, %s39, %s40
      %p44 = pneg %p38
      %p45 = scmp.eq.s32.totalorder %s15, 1
      %p46 = por %p44, %p45
      %p47 = scmp.ne.s32.totalorder %s39, %s42
      %p48 = scmp.eq.s32.totalorder %s15, 0
      %p49 = por %p47, %p48
      %p50 = scmp.ne.s32.totalorder %s39, %s42
      %p51 = scmp.eq.s32.totalorder %s20, 1
      %p52 = por %p50, %p51
      %p53 = scmp.ne.s32.totalorder %s42, %s43
      %p54 = scmp.eq.s32.totalorder %s20, 0
      %p55 = por %p53, %p54
      %p56 = scmp.ne.s32.totalorder %s42, %s43
      %p57 = scmp.eq.s32.totalorder %s21, 1
      %p58 = por %p56, %p57
      %p60 = scmp.ne.s32.totalorder %s43, %s59
      %p61 = scmp.eq.s32.totalorder %s21, 0
      %p62 = por %p60, %p61
      %s64 = sadd.s32 %s63, 1
      %p67 = scmp.eq.s32.totalorder %s15, 1
      %p68 = scmp.ne.s32.totalorder %s63, %s65
      %p69 = scmp.eq.s32.totalorder %s15, 0
      %p70 = por %p68, %p69
      %p71 = scmp.ne.s32.totalorder %s63, %s65
      %p72 = scmp.eq.s32.totalorder %s20, 1
      %p73 = por %p71, %p72
      %p74 = scmp.ne.s32.totalorder %s65, %s66
      %p75 = scmp.eq.s32.totalorder %s20, 0
      %p76 = por %p74, %p75
      %p77 = scmp.ne.s32.totalorder %s65, %s66
      %p78 = scmp.eq.s32.totalorder %s21, 1
      %p79 = por %p77, %p78
      %p81 = scmp.ne.s32.totalorder %s66, %s80
      %p82 = scmp.eq.s32.totalorder %s21, 0
      %p83 = por %p81, %p82
      %s85 = sadd.s32 %s84, 1
      %p88 = scmp.eq.s32.totalorder %s15, 1
      %p89 = scmp.ne.s32.totalorder %s84, %s86
      %p90 = scmp.eq.s32.totalorder %s15, 0
      %p91 = por %p89, %p90
      %p92 = scmp.ne.s32.totalorder %s84, %s86
      %p93 = scmp.eq.s32.totalorder %s20, 1
      %p94 = por %p92, %p93
      %p95 = scmp.ne.s32.totalorder %s86, %s87
      %p96 = scmp.eq.s32.totalorder %s20, 0
      %p97 = por %p95, %p96
      %p98 = scmp.ne.s32.totalorder %s86, %s87
      %p99 = scmp.eq.s32.totalorder %s21, 1
      %p100 = por %p98, %p99
      %p102 = scmp.ne.s32.totalorder %s87, %s101
      %p103 = scmp.eq.s32.totalorder %s21, 0
      %p104 = por %p102, %p103
      %s105 = ssub.s32 %s22, %s34
      %p106 = scmp.eq.s32.totalorder %s105, 0
      %s108 = sadd.s32 %s107, 1
      %s109 = scalar_select %p106, %s107, %s108
      %p112 = pneg %p106
      %p113 = scmp.eq.s32.totalorder %s15, 1
      %p114 = por %p112, %p113
      %p115 = scmp.ne.s32.totalorder %s107, %s110
      %p116 = scmp.eq.s32.totalorder %s15, 0
      %p117 = por %p115, %p116
      %p118 = scmp.ne.s32.totalorder %s107, %s110
      %p119 = scmp.eq.s32.totalorder %s20, 1
      %p120 = por %p118, %p119
      %p121 = scmp.ne.s32.totalorder %s110, %s111
      %p122 = scmp.eq.s32.totalorder %s20, 0
      %p123 = por %p121, %p122
      %p124 = scmp.ne.s32.totalorder %s110, %s111
      %p125 = scmp.eq.s32.totalorder %s21, 1
      %p126 = por %p124, %p125
      %p128 = scmp.ne.s32.totalorder %s111, %s127
      %p129 = scmp.eq.s32.totalorder %s21, 0
      %p130 = por %p128, %p129
      %p131 = scmp.le.s32.totalorder 1, %s15
      %p132 = scmp.lt.s32.totalorder %s15, 3
      %p133 = pnand %p131, %p132
      %p134 = pneg %p133
      // Predicated region
      $region9: #{tpu_custom_call.1} parent=5 // pred_check
        _
      $region10: #{tpu_custom_call.1} parent=5 // pred_check_branch
        %136 = sbr.rel (%p133) target = $region12
      $region11: #{tpu_custom_call.1} parent=5 // pred_region
        %s137 = ssub.s32 %s15, 1
        // Predicated region
        $region13: #{tpu_custom_call.1} parent=11 // pred_check
          %p138 = pneg %p76
        $region14: #{tpu_custom_call.1} parent=11 // pred_check_branch
          %140 = sbr.rel (%p138) target = $region16
        $region15: #{tpu_custom_call.1} parent=11 // pred_region
          _
        $region16: #{tpu_custom_call.1} parent=11 // pred_fallthru
          _
        // Predicated region
        $region17: #{tpu_custom_call.1} parent=11 // pred_check
          %p141 = pneg %p97
        $region18: #{tpu_custom_call.1} parent=11 // pred_check_branch
          %143 = sbr.rel (%p141) target = $region20
        $region19: #{tpu_custom_call.1} parent=11 // pred_region
          _
        $region20: #{tpu_custom_call.1} parent=11 // pred_fallthru
          _
      $region12: #{tpu_custom_call.1} parent=5 // pred_fallthru
        _
      %p144 = scmp.lt.s32.totalorder %s15, 2
      // Predicated region
      $region21: #{tpu_custom_call.1} parent=5 // pred_check
        %p145 = pneg %p144
      $region22: #{tpu_custom_call.1} parent=5 // pred_check_branch
        %147 = sbr.rel (%p145) target = $region24
      $region23: #{tpu_custom_call.1} parent=5 // pred_region
        // Predicated region
        $region25: #{tpu_custom_call.1} parent=23 // pred_check
          %p148 = pneg %p49
        $region26: #{tpu_custom_call.1} parent=23 // pred_check_branch
          %150 = sbr.rel (%p148) target = $region28
        $region27: #{tpu_custom_call.1} parent=23 // pred_region
          %s151 = sand.u32 %s39, 1
          %s152 = scalar_lea.sflag [#allocation4], %s151
          %s153 = sand.u32 %s39, 1
          %s154 = smul.addr %s153, 16
          %s155 = scalar_lea.vmem [#allocation3], %s154
          %s156 = smul.u32 2, %s23
          %s158 = ssub.s32 256, 256
          %159 = vsyncadd %s152, %s158
          %s160 = smul.addr %s22, 2
          %s161 = sadd.s32 %s156, %s160
          %s162 = smul.addr %s161, 128
          %s163 = scalar_lea.hbm %s0, %s162
          %s165 = sshll.u32 %s155, 4
          %s166 = int_to_ptr.vmem [resolvable:$true] %s165
          %168 = dma.hbm_to_vmem [thread:$0]  %s163, 256, %s166, %s152
        $region28: #{tpu_custom_call.1} parent=23 // pred_fallthru
          _
      $region24: #{tpu_custom_call.1} parent=5 // pred_fallthru
        _
      %p169 = scmp.le.s32.totalorder 1, %s15
      %p170 = scmp.lt.s32.totalorder %s15, 3
      %p171 = pnand %p169, %p170
      %p172 = pneg %p171
      // Predicated region
      $region29: #{tpu_custom_call.1} parent=5 // pred_check
        _
      $region30: #{tpu_custom_call.1} parent=5 // pred_check_branch
        %174 = sbr.rel (%p171) target = $region32
      $region31: #{tpu_custom_call.1} parent=5 // pred_region
        %s175 = ssub.s32 %s15, 1
        %s176 = sand.u32 %s42, 1
        %s177 = scalar_lea.sflag [#allocation4], %s176
        %s178 = sand.u32 %s42, 1
        %s179 = smul.addr %s178, 16
        %s180 = scalar_lea.vmem [#allocation3], %s179
        // Predicated region
        $region33: #{tpu_custom_call.1} parent=31 // pred_check
          %p181 = pneg %p55
        $region34: #{tpu_custom_call.1} parent=31 // pred_check_branch
          %183 = sbr.rel (%p181) target = $region36
        $region35: #{tpu_custom_call.1} parent=31 // pred_region
          %184 = dma.done %s177, 256
        $region36: #{tpu_custom_call.1} parent=31 // pred_fallthru
          _
        %s185 = sand.u32 %s42, 1
        %s186 = scalar_lea.sflag [#allocation4], %s185
        %s187 = sand.u32 %s42, 1
        %s188 = smul.addr %s187, 16
        %s189 = scalar_lea.vmem [#allocation3], %s188
        %p190 = pneg %p55
        %p191 = pneg %p52
        %p192 = pneg %p76
        %p193 = pneg %p73
        %p194 = pneg %p97
        %p195 = pneg %p94
        %p196 = pneg %p123
        %p197 = pneg %p120
        %s198 = sand.u32 %s110, 1
        %s199 = scalar_lea.sflag [#allocation5], %s198
        %s200 = sand.u32 %s110, 1
        %s201 = scalar_lea.vmem [#allocation6], %s200
        %s202 = smul.u32 2, %s25
        %p203 = scmp.eq.s32.totalorder %s25, 0
        // Predicated region
        $region37: #{tpu_custom_call.1} parent=31 // pred_check
          %p204 = pneg %p203
        $region38: #{tpu_custom_call.1} parent=31 // pred_check_branch
          %206 = sbr.rel (%p204) target = $region40
        $region39: #{tpu_custom_call.1} parent=31 // pred_region
          %207 = vst [vmem:[#allocation2] sm:$0xff] 0.0
        $region40: #{tpu_custom_call.1} parent=31 // pred_fallthru
          _
        %v208 = vld [vmem:[%s180] sm:$0xff]
        %v209 = vld [vmem:[%s180 + $0x8] sm:$0xff]
        %v210 = vld [vmem:[#allocation2] sm:$0xff]
        %v211 = vadd.f32 %v210, %v208
        %v212 = vadd.f32 %v211, %v209
        %213 = vst [vmem:[#allocation2] sm:$0xff] %v212
        // Predicated region
        $region41: #{tpu_custom_call.1} parent=31 // pred_check
          %p214 = pneg %p203
        $region42: #{tpu_custom_call.1} parent=31 // pred_check_branch
          %216 = sbr.rel (%p214) target = $region44
        $region43: #{tpu_custom_call.1} parent=31 // pred_region
          %v217 = vld [vmem:[#allocation2] sm:$0xff]
          %218 = vadd.xlane.f32.xlu0 %v217
          %v219 = vpop.xlane.xlu0 %218
          %v220 = vmul.f32 %v219, 0.00390625
          %v221 = vld [vmem:[%s1] sm:$0xff]
          %v222 = vmul.f32 %v221, %v220
          %vm223 = vcmask 31744
          %v224 = vsel %vm223, %v222, 0.0
          %v225 = vrot.slane %v224, 4
          %v226 = vadd.f32 %v224, %v225
          %v227 = vrot.slane %v226, 2
          %v228 = vadd.f32 %v226, %v227
          %v229 = vrot.slane %v228, 1
          %v230 = vadd.f32 %v228, %v229
          %v231 = vld [vmem:[%s2] sm:$0x1]
          %v232 = vadd.f32 %v230, %v231
          %vm233 = vcmask 24576
          %v234 = vsel %vm233, %v232, -inf
          %235 = vmax.xlane.f32.xlu0 %v234
          %v236 = vpop.xlane.xlu0 %235
          %v237 = vsub.f32 %v232, %v236
          %v238 = vmul.f32 %v237, 1.442695
          %v239 = vpow.pop %v238
          %v240 = vsel %vm233, %v239, 0.0
          %241 = vadd.xlane.f32.xlu0 %v240
          %v242 = vpop.xlane.xlu0 %241
          %v243 = vrcp.pop %v242
          %v244 = vmul.f32 %v239, %v243
          %v245 = vlaneseq
          %v246 = vand.u32 %v245, 127
          %v247 = vsel %vm233, %v244, -inf
          %248 = vmax.xlane.f32.xlu0 %v247
          %v249 = vpop.xlane.xlu0 %248
          %vm250 = vcmp.ge.f32.partialorder %v244, %v249
          %v251 = vsel %vm250, %v246, 4
          %v252 = vsel %vm233, %v251, 2147483647
          %v253 = vand.u32 %v252, 65535
          %v254 = vshra.s32 %v252, 16
          %v255 = vcvt.s32.f32 %v253
          %v256 = vcvt.s32.f32 %v254
          %257 = vmin.xlane.f32.xlu0 %v256
          %v258 = vpop.xlane.xlu0 %257
          %vm259 = vcmp.eq.f32.partialorder %v256, %v258
          %v260 = vsel %vm259, %v255, inf
          %261 = vmin.xlane.f32.xlu0 %v260
          %v262 = vpop.xlane.xlu0 %261
          %v263 = vcvt.f32.s32 %v262
          %v264 = vcvt.f32.s32 %v258
          %v265 = vshll.u32 %v264, 16
          %v266 = vadd.s32 %v265, %v263
          %vm267 = vcmp.eq.s32.totalorder %v246, %v266
          %v268 = vsel %vm267, 1, 0
          %v269 = vcvt.s32.f32 %v268
          %v270 = vadd.f32 %v269, 0.0
          %v271 = vmul.f32 %v244, %v270
          %272 = vst.msk [vmem:[%s201] sm:$0x1] %vm233, %v271
        $region44: #{tpu_custom_call.1} parent=31 // pred_fallthru
          _
        %s273 = sand.u32 %s110, 1
        %s274 = scalar_lea.sflag [#allocation5], %s273
        %s275 = sand.u32 %s110, 1
        %s276 = scalar_lea.vmem [#allocation6], %s275
        // Predicated region
        $region45: #{tpu_custom_call.1} parent=31 // pred_check
          %p277 = pneg %p120
        $region46: #{tpu_custom_call.1} parent=31 // pred_check_branch
          %279 = sbr.rel (%p277) target = $region48
        $region47: #{tpu_custom_call.1} parent=31 // pred_region
          %s281 = ssub.s32 16, 16
          %282 = vsyncadd %s274, %s281
          %s283 = smul.addr %s24, 16
          %s284 = scalar_lea.hbm %s3, %s283
          %s286 = sshll.u32 %s276, 4
          %s287 = int_to_ptr.vmem [resolvable:$true] %s286
          %289 = dma.vmem_to_hbm [thread:$0]  %s287, 16, %s284, %s274
        $region48: #{tpu_custom_call.1} parent=31 // pred_fallthru
          _
      $region32: #{tpu_custom_call.1} parent=5 // pred_fallthru
        _
      %p290 = scmp.le.s32.totalorder 2, %s15
      // Predicated region
      $region49: #{tpu_custom_call.1} parent=5 // pred_check
        %p291 = pneg %p290
      $region50: #{tpu_custom_call.1} parent=5 // pred_check_branch
        %293 = sbr.rel (%p291) target = $region52
      $region51: #{tpu_custom_call.1} parent=5 // pred_region
        %s294 = ssub.s32 %s15, 2
        // Predicated region
        $region53: #{tpu_custom_call.1} parent=51 // pred_check
          %p295 = pneg %p126
        $region54: #{tpu_custom_call.1} parent=51 // pred_check_branch
          %297 = sbr.rel (%p295) target = $region56
        $region55: #{tpu_custom_call.1} parent=51 // pred_region
          %s298 = sand.u32 %s111, 1
          %s299 = scalar_lea.sflag [#allocation5], %s298
          %s300 = sand.u32 %s111, 1
          %s301 = scalar_lea.vmem [#allocation6], %s300
          %302 = dma.done %s299, 16
        $region56: #{tpu_custom_call.1} parent=51 // pred_fallthru
          _
      $region52: #{tpu_custom_call.1} parent=5 // pred_fallthru
        _
    $region6: #{tpu_custom_call.1} parent=1 // loop_footer
      %s19 = sadd.s32 1, %s15
    $region7: #{tpu_custom_call.1} parent=1 // loop_footer_branch
      %14 = sbr.rel target = $region3
    $region8: #{tpu_custom_call.1} parent=1 // loop_exit
      _
    %303 = vsyncpa [#allocation4], 1
    %s304 = scalar_lea.sflag [#allocation4], 1
    %305 = vsyncpa %s304, 1
    %306 = vsyncpa [#allocation5], 1
    %s307 = scalar_lea.sflag [#allocation5], 1
    %308 = vsyncpa %s307, 1

</llo_original>
